<compile_context>
chip_gen: v5e
topology: v5e:2x2
jax: 0.10.0
libtpu: 0.0.40
codegen_flags: <defaults>
</compile_context>

<pallas_src>
import math

import jax
import jax.numpy as jnp
from jax import lax
from jax.experimental import pallas as pl
from jax.experimental.pallas import tpu as pltpu


def _round_up(x, m):
    return ((x + m - 1) // m) * m


# ---------------------------------------------------------------------------
# Kernel 1: doc path
#   doc_emb, _ = attention(event_query, sent_ctx, sent_ctx)   # scaled dot-prod
#   logits     = doc_emb @ Wc + bc                            # event_cls
#   out        = log_softmax(logits, axis=-1)
# ---------------------------------------------------------------------------
def _doc_kernel(q_ref, ctx_ref, wc_ref, bc_ref, out_ref):
    q = q_ref[...]          # (1, H)  native dtype
    ctx = ctx_ref[...]      # (S, H)  native dtype
    h = q.shape[-1]

    # attention scores (1, S): contract over the shared last (lane) axis
    # ("NT" dot) -- ctx is consumed in native layout, no transpose.
    scores = lax.dot_general(
        q, ctx,
        dimension_numbers=(((1,), (1,)), ((), ())),
        preferred_element_type=jnp.float32,
    ) * (1.0 / math.sqrt(h))

    # softmax over sentences (f32 math; reciprocal on the EUP slot)
    m = jnp.max(scores, axis=-1, keepdims=True)
    e = jnp.exp(scores - m)
    inv = pl.reciprocal(jnp.sum(e, axis=-1, keepdims=True), approx=True)
    p = (e * inv).astype(ctx.dtype)

    # weighted sum of values (values == keys == sent_ctx): (1, H)
    doc_emb = jnp.dot(p, ctx, preferred_element_type=jnp.float32)

    # event classifier: (1, 2).  wc is pre-cast to ctx dtype in the wrapper.
    logits = jnp.dot(doc_emb.astype(ctx.dtype), wc_ref[...],
                     preferred_element_type=jnp.float32)
    logits = logits + bc_ref[...]                      # bias already f32

    # log_softmax over the 2 classes (f32)
    lm = jnp.max(logits, axis=-1, keepdims=True)
    lse = jnp.log(jnp.sum(jnp.exp(logits - lm), axis=-1, keepdims=True)) + lm
    out_ref[...] = (logits - lse).astype(out_ref.dtype)


def doc_forward(event_query, sent_context_emb, wc, bc):
    """event_query: (1,H), sent_context_emb: (S,H), wc: (H,2), bc: (1,2) -> (1,2)."""
    dt = sent_context_emb.dtype
    q = event_query.astype(dt)
    wc = wc.astype(dt)
    bc = bc.astype(jnp.float32)

    vmem = pl.BlockSpec(memory_space=pltpu.MemorySpace.VMEM)
    return pl.pallas_call(
        _doc_kernel,
        out_shape=jax.ShapeDtypeStruct((1, 2), jnp.float32),
        in_specs=[vmem, vmem, vmem, vmem],
        out_specs=vmem,
        compiler_params=pltpu.CompilerParams(vmem_limit_bytes=32 * 1024 * 1024),
    )(q, sent_context_emb, wc, bc)


# ---------------------------------------------------------------------------
# Kernel 2: span path
#   logits = batch_span_emb @ Wf + bf          # field_cls
#   out    = log_softmax(logits, axis=-1)
# Row-tiled over N; weights/bias resident; lane-dense (padded-to-128) output.
# ---------------------------------------------------------------------------
def _span_kernel(x_ref, wf_ref, bf_ref, out_ref):
    # x: (tile_n, H), wf: (H, F_pad) -- same dtype (cast hoisted to wrapper).
    logits = jnp.dot(x_ref[...], wf_ref[...],
                     preferred_element_type=jnp.float32)
    logits = logits + bf_ref[...]                      # (1, F_pad) f32 broadcast

    # log_softmax over fields (padded lanes carry -1e30 bias -> exp() == 0)
    lm = jnp.max(logits, axis=-1, keepdims=True)
    lse = jnp.log(jnp.sum(jnp.exp(logits - lm), axis=-1, keepdims=True)) + lm
    out_ref[...] = (logits - lse).astype(out_ref.dtype)


def span_forward(batch_span_emb, wf, bf, *, tile_n=512):
    """batch_span_emb: (N,H) or (H,), wf: (H,F), bf: (1,F) or (F,) -> (N,F)."""
    if batch_span_emb.ndim == 1:
        batch_span_emb = batch_span_emb[None, :]
    if bf.ndim == 1:
        bf = bf[None, :]
    n, h = batch_span_emb.shape
    f = wf.shape[1]

    # Hoist dtype casts out of the (per-grid-iteration) kernel body.
    x = batch_span_emb
    wf = wf.astype(x.dtype)
    bf = bf.astype(jnp.float32)

    # Lane-dense output: pad classifier columns to a multiple of 128 lanes.
    # Padded bias lanes get -1e30 so they vanish in the log-softmax denom.
    f_pad = _round_up(max(f, 128), 128)
    if f_pad != f:
        wf = jnp.pad(wf, ((0, 0), (0, f_pad - f)))
        bf = jnp.pad(bf, ((0, 0), (0, f_pad - f)), constant_values=-1e30)

    # Row tiling: pad N up to a multiple of the tile and grid over row tiles.
    tile_n = max(8, _round_up(min(tile_n, _round_up(n, 8)), 8))
    n_pad = _round_up(n, tile_n)
    if n_pad != n:
        x = jnp.pad(x, ((0, n_pad - n), (0, 0)))

    out = pl.pallas_call(
        _span_kernel,
        out_shape=jax.ShapeDtypeStruct((n_pad, f_pad), jnp.float32),
        grid=(n_pad // tile_n,),
        in_specs=[
            pl.BlockSpec((tile_n, h), lambda i: (i, 0)),    # activations: tiled
            pl.BlockSpec((h, f_pad), lambda i: (0, 0)),     # weights: resident
            pl.BlockSpec((1, f_pad), lambda i: (0, 0)),     # bias: resident
        ],
        out_specs=pl.BlockSpec((tile_n, f_pad), lambda i: (i, 0)),
        compiler_params=pltpu.CompilerParams(
            dimension_semantics=("parallel",),              # megacore on v7x
            vmem_limit_bytes=32 * 1024 * 1024,              # safe on v5e/v6e/v7x
        ),
    )(x, wf, bf)
    return out[:n, :f]


# ---------------------------------------------------------------------------
# Module-like wrapper with deterministic parameter init
# ---------------------------------------------------------------------------
class EventTableForArgRelPallas:
    def __init__(self, event_type, field_types, hidden_size, min_field_num, key):
        self.event_type = event_type
        self.field_types = field_types
        self.num_fields = len(field_types)
        self.min_field_num = min_field_num
        self.hidden_size = hidden_size

        k1, k2, k3, k4, k5 = jax.random.split(key, 5)
        stdv = 1.0 / math.sqrt(hidden_size)
        # event_query: (1, H), uniform(-stdv, stdv)
        self.event_query = jax.random.uniform(
            k1, (1, hidden_size), jnp.float32, -stdv, stdv)
        # event_cls: Linear(H, 2) -> stored transposed (H, 2); bias (1, 2)
        self.event_cls_w = jax.random.uniform(
            k2, (hidden_size, 2), jnp.float32, -stdv, stdv)
        self.event_cls_b = jax.random.uniform(
            k3, (1, 2), jnp.float32, -stdv, stdv)
        # field_cls: Linear(H, num_fields) -> stored transposed (H, F); bias (1, F)
        self.field_cls_w = jax.random.uniform(
            k4, (hidden_size, self.num_fields), jnp.float32, -stdv, stdv)
        self.field_cls_b = jax.random.uniform(
            k5, (1, self.num_fields), jnp.float32, -stdv, stdv)

    def __call__(self, sent_context_emb=None, batch_span_emb=None, *, tile_n=512):
        assert (sent_context_emb is None) ^ (batch_span_emb is None)
        if sent_context_emb is not None:
            return doc_forward(self.event_query, sent_context_emb,
                               self.event_cls_w, self.event_cls_b)
        return span_forward(batch_span_emb, self.field_cls_w, self.field_cls_b,
                            tile_n=tile_n)


# ---------------------------------------------------------------------------
# Pure-JAX reference for a sanity check
# ---------------------------------------------------------------------------
def _ref_doc(q, ctx, wc, bc):
    scores = (q @ ctx.T) / math.sqrt(q.shape[-1])
    p = jax.nn.softmax(scores, axis=-1)
    doc_emb = p @ ctx
    return jax.nn.log_softmax(doc_emb @ wc + bc, axis=-1)


def _ref_span(x, wf, bf):
    return jax.nn.log_softmax(x @ wf + bf, axis=-1)


if __name__ == "__main__":
    key = jax.random.PRNGKey(0)
    k_params, k_ctx, k_span = jax.random.split(key, 3)

    hidden = 32
    num_sents = 8
    num_spans = 20                       # not a multiple of 8 -> exercises row padding
    field_types = [0, 1, 2, 3]           # num_fields = 4

    table = EventTableForArgRelPallas(
        event_type="EquityFreeze", field_types=field_types,
        hidden_size=hidden, min_field_num=2, key=k_params)

    sent_ctx = jax.random.normal(k_ctx, (num_sents, hidden), jnp.float32)
    span_emb = jax.random.normal(k_span, (num_spans, hidden), jnp.float32)

    doc_logp = table(sent_context_emb=sent_ctx)
    # small tile_n so the test exercises a multi-block grid (3 row tiles)
    span_logp = table(batch_span_emb=span_emb, tile_n=8)
    jax.block_until_ready((doc_logp, span_logp))

    # correctness check against pure-JAX reference
    ref_doc = _ref_doc(table.event_query, sent_ctx,
                       table.event_cls_w, table.event_cls_b)
    ref_span = _ref_span(span_emb, table.field_cls_w, table.field_cls_b)
    assert doc_logp.shape == (1, 2)
    assert span_logp.shape == (num_spans, len(field_types))
    # doc path uses approx=True reciprocal (EUP) -> slightly looser tolerance
    assert jnp.allclose(doc_logp, ref_doc, atol=2e-3), "doc path mismatch"
    assert jnp.allclose(span_logp, ref_span, atol=1e-3), "span path mismatch"

    print("KERNEL_OK")
</pallas_src>

<mosaic_0001>
module attributes {stable_mosaic.version = 11 : i64} {
  func.func @_doc_kernel(%arg0: memref<1x32xf32, #tpu.memory_space<vmem>>, %arg1: memref<8x32xf32, #tpu.memory_space<vmem>>, %arg2: memref<32x2xf32, #tpu.memory_space<vmem>>, %arg3: memref<1x2xf32, #tpu.memory_space<vmem>>, %arg4: memref<1x2xf32, #tpu.memory_space<vmem>>) attributes {dimension_semantics = [], scalar_prefetch = 0 : i64, scratch_operands = 0 : i64, tpu.core_type = #tpu.core_type<tc>} {
    %c0 = arith.constant 0 : index
    %c0_0 = arith.constant 0 : index
    %0 = vector.load %arg0[%c0, %c0_0] : memref<1x32xf32, #tpu.memory_space<vmem>>, vector<1x32xf32>
    %c0_1 = arith.constant 0 : index
    %c0_2 = arith.constant 0 : index
    %1 = vector.load %arg1[%c0_1, %c0_2] : memref<8x32xf32, #tpu.memory_space<vmem>>, vector<8x32xf32>
    %cst = arith.constant dense<0.000000e+00> : vector<1x8xf32>
    %2 = tpu.matmul %0, %1, %cst {dimension_numbers = #tpu.dot_dimension_numbers<[1], [1], [0], [0], [0, 0, 1, 0], [], []>} : vector<1x32xf32>, vector<8x32xf32>, vector<1x8xf32> -> vector<1x8xf32>
    %cst_3 = arith.constant 0.176776692 : f32
    %3 = vector.broadcast %cst_3 : f32 to vector<1x8xf32>
    %4 = arith.mulf %2, %3 : vector<1x8xf32>
    %cst_4 = arith.constant dense<0xFF800000> : vector<1xf32>
    %5 = vector.multi_reduction <maximumf>, %4, %cst_4 [1] : vector<1x8xf32> to vector<1xf32>
    %6 = vector.shape_cast %5 : vector<1xf32> to vector<1x1xf32>
    %7 = vector.broadcast %6 : vector<1x1xf32> to vector<1x8xf32>
    %8 = arith.subf %4, %7 : vector<1x8xf32>
    %9 = math.exp %8 : vector<1x8xf32>
    %cst_5 = arith.constant dense<0.000000e+00> : vector<1xf32>
    %10 = vector.multi_reduction <add>, %9, %cst_5 [1] : vector<1x8xf32> to vector<1xf32>
    %11 = vector.shape_cast %10 : vector<1xf32> to vector<1x1xf32>
    %12 = tpu.reciprocal %11 {approx = true} : vector<1x1xf32> -> vector<1x1xf32>
    %13 = vector.broadcast %12 : vector<1x1xf32> to vector<1x8xf32>
    %14 = arith.mulf %9, %13 : vector<1x8xf32>
    %cst_6 = arith.constant dense<0.000000e+00> : vector<1x32xf32>
    %15 = tpu.matmul %14, %1, %cst_6 {dimension_numbers = #tpu.dot_dimension_numbers<[1], [0], [0], [1], [0, 0, 1, 1], [], []>} : vector<1x8xf32>, vector<8x32xf32>, vector<1x32xf32> -> vector<1x32xf32>
    %c0_7 = arith.constant 0 : index
    %c0_8 = arith.constant 0 : index
    %16 = vector.load %arg2[%c0_7, %c0_8] : memref<32x2xf32, #tpu.memory_space<vmem>>, vector<32x2xf32>
    %cst_9 = arith.constant dense<0.000000e+00> : vector<1x2xf32>
    %17 = tpu.matmul %15, %16, %cst_9 {dimension_numbers = #tpu.dot_dimension_numbers<[1], [0], [0], [1], [0, 0, 1, 1], [], []>} : vector<1x32xf32>, vector<32x2xf32>, vector<1x2xf32> -> vector<1x2xf32>
    %c0_10 = arith.constant 0 : index
    %c0_11 = arith.constant 0 : index
    %18 = vector.load %arg3[%c0_10, %c0_11] : memref<1x2xf32, #tpu.memory_space<vmem>>, vector<1x2xf32>
    %19 = arith.addf %17, %18 : vector<1x2xf32>
    %cst_12 = arith.constant dense<0xFF800000> : vector<1xf32>
    %20 = vector.multi_reduction <maximumf>, %19, %cst_12 [1] : vector<1x2xf32> to vector<1xf32>
    %21 = vector.shape_cast %20 : vector<1xf32> to vector<1x1xf32>
    %22 = vector.broadcast %21 : vector<1x1xf32> to vector<1x2xf32>
    %23 = arith.subf %19, %22 : vector<1x2xf32>
    %24 = math.exp %23 : vector<1x2xf32>
    %cst_13 = arith.constant dense<0.000000e+00> : vector<1xf32>
    %25 = vector.multi_reduction <add>, %24, %cst_13 [1] : vector<1x2xf32> to vector<1xf32>
    %26 = vector.shape_cast %25 : vector<1xf32> to vector<1x1xf32>
    %27 = math.log %26 : vector<1x1xf32>
    %28 = arith.addf %27, %21 : vector<1x1xf32>
    %29 = vector.broadcast %28 : vector<1x1xf32> to vector<1x2xf32>
    %30 = arith.subf %19, %29 : vector<1x2xf32>
    %c0_14 = arith.constant 0 : index
    %c0_15 = arith.constant 0 : index
    %31 = vector.load %arg4[%c0_14, %c0_15] : memref<1x2xf32, #tpu.memory_space<vmem>>, vector<1x2xf32>
    tpu.vector_store %arg4[%c0_14, %c0_15], %30 {strides = array<i32>} : memref<1x2xf32, #tpu.memory_space<vmem>>, vector<1x2xf32>,
    return
  }
}

</mosaic_0001>

<llo_original>
// kernel: tpu_custom_call.1
$region0: #{tpu_custom_call.1}
  #allocation0 [shape = 'u32[]', space=smem, size = 0x4, offset = 0x4, fixed_abs, tag = 'smem constant byte address 0x4 - core index']
  #allocation1 [shape = 'u32[72,128]{1,0:T(1,128)}', space=vmem, size = 0x9000, scoped, tag = 'internal scratch']
  %s0 = inlined_call_operand.vmem [shape: f32[1,32], index: 0, kind: input, shape index: {}]
  %s1 = inlined_call_operand.vmem [shape: f32[8,32], index: 1, kind: input, shape index: {}]
  %s2 = inlined_call_operand.vmem [shape: f32[32,2], index: 2, kind: input, shape index: {}]
  %s3 = inlined_call_operand.vmem [shape: f32[1,2], index: 3, kind: input, shape index: {}]
  %s4 = inlined_call_operand.hbm [shape: f32[1,2], index: 4, kind: output, shape index: {}]
  %s5 = sld [smem:[#allocation0]]
  $region26: #{tpu_custom_call.1} parent=0
    _
  %s7 = ssub.s32 1, %s5
  %s8 = scalar_select 0, %s7, %s5
  $region1: #{tpu_custom_call.1} parent=0
    #allocation2 [shape = 'u8[512]{0}', space=vmem, size = 0x400, scoped, tag = 'output window, operand 0, single buffered']
    #allocation3 [shape = 's32[1]{0}', space=sflag, size = 0x4, scoped, tag = 'scoped memory for tpu_custom_call.1']
    %9 = vsyncpa [#allocation3], 0
    // Predicated region
    $region2: #{tpu_custom_call.1} parent=1 // pred_check
      _
    $region3: #{tpu_custom_call.1} parent=1 // pred_check_branch
      %11 = sbr.rel (0) target = $region5
    $region4: #{tpu_custom_call.1} parent=1 // pred_region
      _
    $region5: #{tpu_custom_call.1} parent=1 // pred_fallthru
      _
    // Predicated region
    $region6: #{tpu_custom_call.1} parent=1 // pred_check
      _
    $region7: #{tpu_custom_call.1} parent=1 // pred_check_branch
      %13 = sbr.rel (0) target = $region9
    $region8: #{tpu_custom_call.1} parent=1 // pred_region
      _
    $region9: #{tpu_custom_call.1} parent=1 // pred_fallthru
      _
    // Predicated region
    $region10: #{tpu_custom_call.1} parent=1 // pred_check
      _
    $region11: #{tpu_custom_call.1} parent=1 // pred_check_branch
      %15 = sbr.rel (0) target = $region13
    $region12: #{tpu_custom_call.1} parent=1 // pred_region
      _
    $region13: #{tpu_custom_call.1} parent=1 // pred_fallthru
      _
    // Predicated region
    $region14: #{tpu_custom_call.1} parent=1 // pred_check
      _
    $region15: #{tpu_custom_call.1} parent=1 // pred_check_branch
      %17 = sbr.rel (0) target = $region17
    $region16: #{tpu_custom_call.1} parent=1 // pred_region
      _
    $region17: #{tpu_custom_call.1} parent=1 // pred_fallthru
      _
    %v18 = vld [vmem:[%s0] sm:$0x1]
    %v19 = vld [vmem:[%s1] sm:$0xff]
    %vm20 = vcmask 261120
    %v22 = vsel %vm20, %v18, 0
    %v25 = vsel %vm20, %v19, 0
    %27 = vmatpush.xpose.msra.mxu0 0.0
    %28 = vmatpush.xpose.msra.mxu0 0.0
    %29 = vmatpush.xpose.msra.mxu0 0.0
    %30 = vmatpush.xpose.msra.mxu0 0.0
    %31 = vmatpush.xpose.msra.mxu0 0.0
    %32 = vmatpush.xpose.msra.mxu0 0.0
    %33 = vmatpush.xpose.msra.mxu0 0.0
    %34 = vmatpush.xpose.msra.mxu0 0.0
    %35 = vmatpush.xpose.msra.mxu0 0.0
    %36 = vmatpush.xpose.msra.mxu0 0.0
    %37 = vmatpush.xpose.msra.mxu0 0.0
    %38 = vmatpush.xpose.msra.mxu0 0.0
    %39 = vmatpush.xpose.msra.mxu0 0.0
    %40 = vmatpush.xpose.msra.mxu0 0.0
    %41 = vmatpush.xpose.msra.mxu0 0.0
    %42 = vmatpush.xpose.msra.mxu0 %v25
    %43 = vmatmul.f32.gmra.mxu0 %v22
    %v44 = vpop.f32.mrf.mxu0
    %v45 = vadd.f32 0.0, %v44
    %46 = vdwg.mxu0
    %v47 = vmul.f32 %v45, 0.17677669
    %vm48 = vcmask 57344
    %v49 = vsel %vm48, %v47, -inf
    %50 = vmax.xlane.f32.xlu0 %v49
    %v51 = vpop.xlane.xlu0 %50
    %v52 = vsub.f32 %v47, %v51
    %v53 = vmul.f32 %v52, 1.442695
    %v54 = vpow.pop %v53
    %v55 = vsel %vm48, %v54, 0.0
    %56 = vadd.xlane.f32.xlu0 %v55
    %v57 = vpop.xlane.xlu0 %56
    %v58 = vrcp.pop %v57
    %v59 = vmul.f32 %v54, %v58
    %vm60 = vcmask 64512
    %v62 = vsel %vm60, %v59, 0
    %64 = vmatpush.msra.mxu0 0.0
    %65 = vmatpush.msra.mxu0 0.0
    %66 = vmatpush.msra.mxu0 0.0
    %67 = vmatpush.msra.mxu0 0.0
    %68 = vmatpush.msra.mxu0 0.0
    %69 = vmatpush.msra.mxu0 0.0
    %70 = vmatpush.msra.mxu0 0.0
    %71 = vmatpush.msra.mxu0 0.0
    %72 = vmatpush.msra.mxu0 0.0
    %73 = vmatpush.msra.mxu0 0.0
    %74 = vmatpush.msra.mxu0 0.0
    %75 = vmatpush.msra.mxu0 0.0
    %76 = vmatpush.msra.mxu0 0.0
    %77 = vmatpush.msra.mxu0 0.0
    %78 = vmatpush.msra.mxu0 0.0
    %79 = vmatpush.msra.mxu0 %v19
    %80 = vmatmul.f32.gmra.mxu0 %v62
    %v81 = vpop.f32.mrf.mxu0
    %v82 = vadd.f32 0.0, %v81
    %83 = vdwg.mxu0
    %v84 = vld [vmem:[%s2] sm:$0xff]
    %v85 = vld [vmem:[%s2 + $0x8] sm:$0xff]
    %v86 = vld [vmem:[%s2 + $0x10] sm:$0xff]
    %v87 = vld [vmem:[%s2 + $0x18] sm:$0xff]
    %v88 = vld [vmem:[%s3] sm:$0x1]
    %v90 = vsel %vm20, %v82, 0
    %92 = vmatpush.msra.mxu0 0.0
    %93 = vmatpush.msra.mxu0 0.0
    %94 = vmatpush.msra.mxu0 0.0
    %95 = vmatpush.msra.mxu0 0.0
    %96 = vmatpush.msra.mxu0 0.0
    %97 = vmatpush.msra.mxu0 0.0
    %98 = vmatpush.msra.mxu0 0.0
    %99 = vmatpush.msra.mxu0 0.0
    %100 = vmatpush.msra.mxu0 0.0
    %101 = vmatpush.msra.mxu0 0.0
    %102 = vmatpush.msra.mxu0 0.0
    %103 = vmatpush.msra.mxu0 0.0
    %104 = vmatpush.msra.mxu0 %v87
    %105 = vmatpush.msra.mxu0 %v86
    %106 = vmatpush.msra.mxu0 %v85
    %107 = vmatpush.msra.mxu0 %v84
    %108 = vmatmul.f32.gmra.mxu0 %v90
    %v109 = vpop.f32.mrf.mxu0
    %v110 = vadd.f32 %v88, %v109
    %111 = vdwg.mxu0
    %vm112 = vcmask 8192
    %v113 = vsel %vm112, %v110, -inf
    %114 = vmax.xlane.f32.xlu0 %v113
    %v115 = vpop.xlane.xlu0 %114
    %v116 = vsub.f32 %v110, %v115
    %v117 = vmul.f32 %v116, 1.442695
    %v118 = vpow.pop %v117
    %v119 = vsel %vm112, %v118, 0.0
    %120 = vadd.xlane.f32.xlu0 %v119
    %v121 = vpop.xlane.xlu0 %120
    %v122 = vlog2.pop %v121
    %v123 = vmul.f32 %v122, 0.6931472
    %v124 = vadd.f32 %v123, %v115
    %v125 = vsub.f32 %v110, %v124
    %126 = vst.msk [vmem:[#allocation2] sm:$0x1] %vm112, %v125
    // Predicated region
    $region18: #{tpu_custom_call.1} parent=1 // pred_check
      _
    $region19: #{tpu_custom_call.1} parent=1 // pred_check_branch
      %128 = sbr.rel (0) target = $region21
    $region20: #{tpu_custom_call.1} parent=1 // pred_region
      %130 = vsyncadd [#allocation3], 0
      %s132 = sshll.u32 [#allocation2], 4
      %s133 = int_to_ptr.vmem [resolvable:$true] %s132
      %s134 = sshll.u32 %s4, 4
      %s135 = int_to_ptr.hbm [resolvable:$true] %s134
      %137 = dma.vmem_to_hbm [thread:$0]  %s133, 16, %s135, [#allocation3]
    $region21: #{tpu_custom_call.1} parent=1 // pred_fallthru
      _
    // Predicated region
    $region22: #{tpu_custom_call.1} parent=1 // pred_check
      _
    $region23: #{tpu_custom_call.1} parent=1 // pred_check_branch
      %139 = sbr.rel (0) target = $region25
    $region24: #{tpu_custom_call.1} parent=1 // pred_region
      %141 = dma.done [#allocation3], 16
    $region25: #{tpu_custom_call.1} parent=1 // pred_fallthru
      _
    %142 = vsyncpa [#allocation3], 1

</llo_original>
